<compile_context>
chip_gen: v6e
topology: v6e:2x2x1
jax: 0.10.0
libtpu: 0.0.40
codegen_flags: <defaults>
</compile_context>

<pallas_src>
import functools

import jax
import jax.numpy as jnp
from jax.experimental import pallas as pl
from jax.experimental.pallas import tpu as pltpu


LANE = 128  # TPU lane width — pad the class dim of the output to a multiple of this.


def _vmem_spec():
    return pl.BlockSpec(memory_space=pltpu.MemorySpace.VMEM)


# ---------------------------------------------------------------------------
# Fused kernel: encode -> L x (angular agg + rotation) -> classifier -> log_softmax
# ---------------------------------------------------------------------------
def _fused_gnn_kernel(x_ref, a_ref, w1_ref, vecs_ref, w2_ref, w3_ref, b3_ref,
                      o_ref, *, n_layers):
    f32, bf16 = jnp.float32, jnp.bfloat16

    # packed per-channel vectors (one DMA): rows 0..3 = b1, ln_gamma, ln_beta, b2
    vecs = vecs_ref[...]
    b1 = vecs[0:1, :]
    ln_g = vecs[1:2, :]
    ln_b = vecs[2:3, :]
    b2 = vecs[3:4, :]

    # ---- encode: H = LayerNorm(ReLU(x @ W1 + b1)) --------------------------
    h = jnp.dot(x_ref[...].astype(bf16), w1_ref[...].astype(bf16),
                preferred_element_type=f32) + b1
    h = jnp.maximum(h, 0.0)                                    # ReLU
    mean = jnp.mean(h, axis=1, keepdims=True)                  # LayerNorm(hidden)
    var = jnp.mean((h - mean) ** 2, axis=1, keepdims=True)
    h = (h - mean) * jax.lax.rsqrt(var + 1e-5) * ln_g + ln_b
    # TODO(synk): F.dropout(training=True) is stochastic; eval-mode identity used.

    n, hid = h.shape

    # ---- degree normalization (A_norm = D^-1/2 A D^-1/2 never materialized) ----
    a = a_ref[...]
    deg = jnp.sum(a, axis=1, keepdims=True)                    # sparse.sum(A, dim=1)
    d_inv = jnp.where(deg > 0.0, jax.lax.rsqrt(deg), 0.0)      # D^-0.5, inf -> 0
    a_bf = a.astype(bf16)

    # Row inv-norm: single EUP rsqrt, hoisted — the 2x2 rotation below preserves
    # each row's L2 norm.  (eps folded under the sqrt; ~1e-4-level drift vs
    # PyTorch's 1/(norm+1e-4).)
    inv_norm = jax.lax.rsqrt(jnp.sum(h * h, axis=1, keepdims=True) + 1e-8)

    col = jax.lax.broadcasted_iota(jnp.int32, (n, hid), 1)     # hoisted

    # ---- L layers: angular aggregation + rotation of feature columns 0,1 ----
    def layer(_, f):
        fn = f * inv_norm
        # theta_i = sum_j A_norm[i,j] * (fn_i . fn_j)
        #         = rowsum(fn ⊙ (d_inv * (A @ (d_inv * fn))))   — no (N,N) temps
        agg = d_inv * jnp.dot(a_bf, (fn * d_inv).astype(bf16),
                              preferred_element_type=f32)
        theta = jnp.sum(fn * agg, axis=1, keepdims=True)        # (N, 1)
        cos_t = jnp.cos(theta)
        sin_t = jnp.sin(theta)
        f0 = f[:, 0:1]
        f1 = f[:, 1:2]
        new0 = cos_t * f0 - sin_t * f1
        new1 = sin_t * f0 + cos_t * f1
        # Only columns 0,1 change; with hid=32 a row-set is a single vreg, so the
        # two selects below are one vreg-op each (kept as selects — safest lowering).
        return jnp.where(col == 0, new0, jnp.where(col == 1, new1, f))

    h = jax.lax.fori_loop(0, n_layers, layer, h, unroll=True)

    # ---- classifier: Linear -> ReLU -> (BatchNorm folded host-side) -> Linear ----
    c = jnp.dot(h.astype(bf16), w2_ref[...].astype(bf16),
                preferred_element_type=f32) + b2
    c = jnp.maximum(c, 0.0)
    logits = jnp.dot(c.astype(bf16), w3_ref[...].astype(bf16),
                     preferred_element_type=f32) + b3_ref[...]

    # ---- log_softmax: padded class lanes carry a -1e30 bias -> exp underflows to 0
    m = jnp.max(logits, axis=1, keepdims=True)
    z = logits - m
    lse = jnp.log(jnp.sum(jnp.exp(z), axis=1, keepdims=True))
    o_ref[...] = z - lse                                        # lane-dense full store


# ---------------------------------------------------------------------------
# Forward pass wrapper (one pallas_call for the whole network)
# ---------------------------------------------------------------------------
def custom_gnn_forward(x, a_dense, params, L):
    n, _ = x.shape
    hid = params["w1"].shape[1]
    out_dim = params["w3"].shape[1]
    out_pad = ((out_dim + LANE - 1) // LANE) * LANE             # lane-dense output width

    # ---- fold eval-mode BatchNorm1d into the final Linear (host-side) -------
    scale = params["bn_g"] / jnp.sqrt(params["bn_v"] + 1e-5)    # (1, hid)
    shift = params["bn_b"] - params["bn_m"] * scale             # (1, hid)
    w3_f = scale.reshape(hid, 1) * params["w3"]                 # diag(scale) @ W3
    b3_f = params["b3"] + shift @ params["w3"]                  # (1, out_dim)

    # lane-pad the head; padded bias lanes get -1e30 so log_softmax ignores them
    w3p = jnp.zeros((hid, out_pad), jnp.float32).at[:, :out_dim].set(w3_f)
    b3p = jnp.full((1, out_pad), -1e30, jnp.float32).at[:, :out_dim].set(b3_f)

    # pack the four (1, hid) per-channel vectors into one (8, hid) sublane group
    vecs = jnp.concatenate(
        [params["b1"], params["ln_g"], params["ln_b"], params["b2"],
         jnp.zeros((4, hid), jnp.float32)], axis=0)             # (8, hid)

    # resident-set-sized VMEM limit (documents per-generation headroom; v7x = 64 MiB/TC)
    resident_bytes = 4 * (x.size + a_dense.size + params["w1"].size + vecs.size
                          + params["w2"].size + w3p.size + b3p.size
                          + n * out_pad + 2 * n * hid)
    vmem_limit = int(min(max(2 * resident_bytes + (8 << 20), 16 << 20), 64 << 20))

    kernel = functools.partial(_fused_gnn_kernel, n_layers=L)
    out_padded = pl.pallas_call(
        kernel,
        out_shape=jax.ShapeDtypeStruct((n, out_pad), jnp.float32),
        in_specs=[_vmem_spec() for _ in range(7)],
        out_specs=_vmem_spec(),
        compiler_params=pltpu.CompilerParams(vmem_limit_bytes=vmem_limit),
    )(x, a_dense, params["w1"], vecs, params["w2"], w3p, b3p)
    return out_padded[:, :out_dim]


# ---------------------------------------------------------------------------
# Parameter init (matches the PyTorch module's init scheme)
# ---------------------------------------------------------------------------
def init_params(key, input_dim, hidden_dim, out_dim):
    k1, k2, k3, k4, k5 = jax.random.split(key, 5)
    # Linear(input_dim, hidden_dim): xavier_uniform weight, zero bias
    xav = (6.0 / (input_dim + hidden_dim)) ** 0.5
    w1 = jax.random.uniform(k1, (input_dim, hidden_dim), jnp.float32, -xav, xav)
    b1 = jnp.zeros((1, hidden_dim), jnp.float32)
    # LayerNorm(hidden_dim)
    ln_g = jnp.ones((1, hidden_dim), jnp.float32)
    ln_b = jnp.zeros((1, hidden_dim), jnp.float32)
    # classifier Linear(hidden, hidden) — PyTorch default-style uniform init
    bnd2 = 1.0 / (hidden_dim ** 0.5)
    w2 = jax.random.uniform(k2, (hidden_dim, hidden_dim), jnp.float32, -bnd2, bnd2)
    b2 = jax.random.uniform(k3, (1, hidden_dim), jnp.float32, -bnd2, bnd2)
    # BatchNorm1d(hidden) fresh init (inference mode; folded into the head host-side)
    bn_g = jnp.ones((1, hidden_dim), jnp.float32)
    bn_b = jnp.zeros((1, hidden_dim), jnp.float32)
    bn_m = jnp.zeros((1, hidden_dim), jnp.float32)
    bn_v = jnp.ones((1, hidden_dim), jnp.float32)
    # classifier Linear(hidden, out)
    w3 = jax.random.uniform(k4, (hidden_dim, out_dim), jnp.float32, -bnd2, bnd2)
    b3 = jax.random.uniform(k5, (1, out_dim), jnp.float32, -bnd2, bnd2)
    return dict(w1=w1, b1=b1, ln_g=ln_g, ln_b=ln_b, w2=w2, b2=b2,
                bn_g=bn_g, bn_b=bn_b, bn_m=bn_m, bn_v=bn_v, w3=w3, b3=b3)


if __name__ == "__main__":
    N, INPUT_DIM, HIDDEN_DIM, OUT_DIM, L = 8, 16, 32, 4, 2

    key = jax.random.PRNGKey(0)
    kx, ka, kp = jax.random.split(key, 3)

    x = jax.random.normal(kx, (N, INPUT_DIM), jnp.float32)

    # deterministic symmetric adjacency with self-loops (dense stand-in for COO)
    rnd = jax.random.uniform(ka, (N, N))
    adj = (rnd > 0.6).astype(jnp.float32)
    adj = jnp.maximum(adj, adj.T)
    adj = jnp.maximum(adj, jnp.eye(N, dtype=jnp.float32))

    params = init_params(kp, INPUT_DIM, HIDDEN_DIM, OUT_DIM)

    out = custom_gnn_forward(x, adj, params, L)
    out = jax.block_until_ready(out)
    assert out.shape == (N, OUT_DIM)
    assert bool(jnp.all(jnp.isfinite(out)))
    # log_softmax rows should sum to ~1 in probability space
    assert bool(jnp.all(jnp.abs(jnp.sum(jnp.exp(out), axis=1) - 1.0) < 1e-4))
    print("KERNEL_OK")
</pallas_src>

<mosaic_0001>
module attributes {stable_mosaic.version = 11 : i64} {
  func.func @_fused_gnn_kernel(%arg0: memref<8x16xf32, #tpu.memory_space<vmem>>, %arg1: memref<8x8xf32, #tpu.memory_space<vmem>>, %arg2: memref<16x32xf32, #tpu.memory_space<vmem>>, %arg3: memref<8x32xf32, #tpu.memory_space<vmem>>, %arg4: memref<32x32xf32, #tpu.memory_space<vmem>>, %arg5: memref<32x128xf32, #tpu.memory_space<vmem>>, %arg6: memref<1x128xf32, #tpu.memory_space<vmem>>, %arg7: memref<8x128xf32, #tpu.memory_space<vmem>>) attributes {dimension_semantics = [], scalar_prefetch = 0 : i64, scratch_operands = 0 : i64, tpu.core_type = #tpu.core_type<tc>} {
    %c0 = arith.constant 0 : index
    %c0_0 = arith.constant 0 : index
    %0 = vector.load %arg3[%c0, %c0_0] : memref<8x32xf32, #tpu.memory_space<vmem>>, vector<8x32xf32>
    %1 = vector.extract_strided_slice %0 {offsets = [0, 0], sizes = [1, 32], strides = [1, 1]} : vector<8x32xf32> to vector<1x32xf32>
    %2 = vector.extract_strided_slice %0 {offsets = [1, 0], sizes = [1, 32], strides = [1, 1]} : vector<8x32xf32> to vector<1x32xf32>
    %3 = vector.extract_strided_slice %0 {offsets = [2, 0], sizes = [1, 32], strides = [1, 1]} : vector<8x32xf32> to vector<1x32xf32>
    %4 = vector.extract_strided_slice %0 {offsets = [3, 0], sizes = [1, 32], strides = [1, 1]} : vector<8x32xf32> to vector<1x32xf32>
    %c0_1 = arith.constant 0 : index
    %c0_2 = arith.constant 0 : index
    %5 = vector.load %arg0[%c0_1, %c0_2] : memref<8x16xf32, #tpu.memory_space<vmem>>, vector<8x16xf32>
    %6 = arith.truncf %5 : vector<8x16xf32> to vector<8x16xbf16>
    %c0_3 = arith.constant 0 : index
    %c0_4 = arith.constant 0 : index
    %7 = vector.load %arg2[%c0_3, %c0_4] : memref<16x32xf32, #tpu.memory_space<vmem>>, vector<16x32xf32>
    %8 = arith.truncf %7 : vector<16x32xf32> to vector<16x32xbf16>
    %cst = arith.constant dense<0.000000e+00> : vector<8x32xf32>
    %9 = tpu.matmul %6, %8, %cst {dimension_numbers = #tpu.dot_dimension_numbers<[1], [0], [0], [1], [0, 0, 1, 1], [], []>} : vector<8x16xbf16>, vector<16x32xbf16>, vector<8x32xf32> -> vector<8x32xf32>
    %10 = vector.broadcast %1 : vector<1x32xf32> to vector<8x32xf32>
    %11 = arith.addf %9, %10 : vector<8x32xf32>
    %cst_5 = arith.constant 0.000000e+00 : f32
    %12 = vector.broadcast %cst_5 : f32 to vector<8x32xf32>
    %13 = arith.maximumf %11, %12 : vector<8x32xf32>
    %cst_6 = arith.constant dense<0.000000e+00> : vector<8xf32>
    %14 = vector.multi_reduction <add>, %13, %cst_6 [1] : vector<8x32xf32> to vector<8xf32>
    %15 = vector.shape_cast %14 : vector<8xf32> to vector<8x1xf32>
    %cst_7 = arith.constant 3.200000e+01 : f32
    %16 = vector.broadcast %cst_7 : f32 to vector<8x1xf32>
    %17 = arith.divf %15, %16 : vector<8x1xf32>
    %18 = vector.broadcast %17 : vector<8x1xf32> to vector<8x32xf32>
    %19 = arith.subf %13, %18 : vector<8x32xf32>
    %20 = arith.mulf %19, %19 : vector<8x32xf32>
    %cst_8 = arith.constant dense<0.000000e+00> : vector<8xf32>
    %21 = vector.multi_reduction <add>, %20, %cst_8 [1] : vector<8x32xf32> to vector<8xf32>
    %22 = vector.shape_cast %21 : vector<8xf32> to vector<8x1xf32>
    %cst_9 = arith.constant 3.200000e+01 : f32
    %23 = vector.broadcast %cst_9 : f32 to vector<8x1xf32>
    %24 = arith.divf %22, %23 : vector<8x1xf32>
    %25 = vector.broadcast %17 : vector<8x1xf32> to vector<8x32xf32>
    %26 = arith.subf %13, %25 : vector<8x32xf32>
    %cst_10 = arith.constant 9.99999974E-6 : f32
    %27 = vector.broadcast %cst_10 : f32 to vector<8x1xf32>
    %28 = arith.addf %24, %27 : vector<8x1xf32>
    %29 = math.rsqrt %28 : vector<8x1xf32>
    %30 = vector.broadcast %29 : vector<8x1xf32> to vector<8x32xf32>
    %31 = arith.mulf %26, %30 : vector<8x32xf32>
    %32 = vector.broadcast %2 : vector<1x32xf32> to vector<8x32xf32>
    %33 = arith.mulf %31, %32 : vector<8x32xf32>
    %34 = vector.broadcast %3 : vector<1x32xf32> to vector<8x32xf32>
    %35 = arith.addf %33, %34 : vector<8x32xf32>
    %c0_11 = arith.constant 0 : index
    %c0_12 = arith.constant 0 : index
    %36 = vector.load %arg1[%c0_11, %c0_12] : memref<8x8xf32, #tpu.memory_space<vmem>>, vector<8x8xf32>
    %cst_13 = arith.constant dense<0.000000e+00> : vector<8xf32>
    %37 = vector.multi_reduction <add>, %36, %cst_13 [1] : vector<8x8xf32> to vector<8xf32>
    %38 = vector.shape_cast %37 : vector<8xf32> to vector<8x1xf32>
    %cst_14 = arith.constant 0.000000e+00 : f32
    %39 = vector.broadcast %cst_14 : f32 to vector<8x1xf32>
    %40 = arith.cmpf ogt, %38, %39 : vector<8x1xf32>
    %41 = math.rsqrt %38 : vector<8x1xf32>
    %cst_15 = arith.constant 0.000000e+00 : f32
    %42 = vector.broadcast %cst_15 : f32 to vector<8x1xf32>
    %43 = arith.select %40, %41, %42 : vector<8x1xi1>, vector<8x1xf32>
    %44 = arith.truncf %36 : vector<8x8xf32> to vector<8x8xbf16>
    %45 = arith.mulf %35, %35 : vector<8x32xf32>
    %cst_16 = arith.constant dense<0.000000e+00> : vector<8xf32>
    %46 = vector.multi_reduction <add>, %45, %cst_16 [1] : vector<8x32xf32> to vector<8xf32>
    %47 = vector.shape_cast %46 : vector<8xf32> to vector<8x1xf32>
    %cst_17 = arith.constant 9.99999993E-9 : f32
    %48 = vector.broadcast %cst_17 : f32 to vector<8x1xf32>
    %49 = arith.addf %47, %48 : vector<8x1xf32>
    %50 = math.rsqrt %49 : vector<8x1xf32>
    %51 = tpu.iota {dimensions = array<i32: 1>} : vector<8x32xi32>
    %c0_i32 = arith.constant 0 : i32
    %52 = vector.broadcast %50 : vector<8x1xf32> to vector<8x32xf32>
    %53 = arith.mulf %35, %52 : vector<8x32xf32>
    %54 = vector.broadcast %43 : vector<8x1xf32> to vector<8x32xf32>
    %55 = arith.mulf %53, %54 : vector<8x32xf32>
    %56 = arith.truncf %55 : vector<8x32xf32> to vector<8x32xbf16>
    %cst_18 = arith.constant dense<0.000000e+00> : vector<8x32xf32>
    %57 = tpu.matmul %44, %56, %cst_18 {dimension_numbers = #tpu.dot_dimension_numbers<[1], [0], [0], [1], [0, 0, 1, 1], [], []>} : vector<8x8xbf16>, vector<8x32xbf16>, vector<8x32xf32> -> vector<8x32xf32>
    %58 = vector.broadcast %43 : vector<8x1xf32> to vector<8x32xf32>
    %59 = arith.mulf %58, %57 : vector<8x32xf32>
    %60 = arith.mulf %53, %59 : vector<8x32xf32>
    %cst_19 = arith.constant dense<0.000000e+00> : vector<8xf32>
    %61 = vector.multi_reduction <add>, %60, %cst_19 [1] : vector<8x32xf32> to vector<8xf32>
    %62 = vector.shape_cast %61 : vector<8xf32> to vector<8x1xf32>
    %63 = math.cos %62 : vector<8x1xf32>
    %64 = math.sin %62 : vector<8x1xf32>
    %65 = vector.extract_strided_slice %35 {offsets = [0, 0], sizes = [8, 1], strides = [1, 1]} : vector<8x32xf32> to vector<8x1xf32>
    %66 = vector.extract_strided_slice %35 {offsets = [0, 1], sizes = [8, 1], strides = [1, 1]} : vector<8x32xf32> to vector<8x1xf32>
    %67 = arith.mulf %63, %65 : vector<8x1xf32>
    %68 = arith.mulf %64, %66 : vector<8x1xf32>
    %69 = arith.subf %67, %68 : vector<8x1xf32>
    %70 = arith.mulf %64, %65 : vector<8x1xf32>
    %71 = arith.mulf %63, %66 : vector<8x1xf32>
    %72 = arith.addf %70, %71 : vector<8x1xf32>
    %c0_i32_20 = arith.constant 0 : i32
    %73 = vector.broadcast %c0_i32_20 : i32 to vector<8x32xi32>
    %74 = arith.cmpi eq, %51, %73 : vector<8x32xi32>
    %c1_i32 = arith.constant 1 : i32
    %75 = vector.broadcast %c1_i32 : i32 to vector<8x32xi32>
    %76 = arith.cmpi eq, %51, %75 : vector<8x32xi32>
    %77 = vector.shape_cast %72 : vector<8x1xf32> to vector<8x1xf32>
    %78 = vector.broadcast %77 : vector<8x1xf32> to vector<8x32xf32>
    %79 = arith.select %76, %78, %35 : vector<8x32xi1>, vector<8x32xf32>
    %80 = vector.shape_cast %69 : vector<8x1xf32> to vector<8x1xf32>
    %81 = vector.broadcast %80 : vector<8x1xf32> to vector<8x32xf32>
    %82 = arith.select %74, %81, %79 : vector<8x32xi1>, vector<8x32xf32>
    %c1_i32_21 = arith.constant 1 : i32
    %83 = vector.broadcast %50 : vector<8x1xf32> to vector<8x32xf32>
    %84 = arith.mulf %82, %83 : vector<8x32xf32>
    %85 = vector.broadcast %43 : vector<8x1xf32> to vector<8x32xf32>
    %86 = arith.mulf %84, %85 : vector<8x32xf32>
    %87 = arith.truncf %86 : vector<8x32xf32> to vector<8x32xbf16>
    %cst_22 = arith.constant dense<0.000000e+00> : vector<8x32xf32>
    %88 = tpu.matmul %44, %87, %cst_22 {dimension_numbers = #tpu.dot_dimension_numbers<[1], [0], [0], [1], [0, 0, 1, 1], [], []>} : vector<8x8xbf16>, vector<8x32xbf16>, vector<8x32xf32> -> vector<8x32xf32>
    %89 = vector.broadcast %43 : vector<8x1xf32> to vector<8x32xf32>
    %90 = arith.mulf %89, %88 : vector<8x32xf32>
    %91 = arith.mulf %84, %90 : vector<8x32xf32>
    %cst_23 = arith.constant dense<0.000000e+00> : vector<8xf32>
    %92 = vector.multi_reduction <add>, %91, %cst_23 [1] : vector<8x32xf32> to vector<8xf32>
    %93 = vector.shape_cast %92 : vector<8xf32> to vector<8x1xf32>
    %94 = math.cos %93 : vector<8x1xf32>
    %95 = math.sin %93 : vector<8x1xf32>
    %96 = vector.extract_strided_slice %82 {offsets = [0, 0], sizes = [8, 1], strides = [1, 1]} : vector<8x32xf32> to vector<8x1xf32>
    %97 = vector.extract_strided_slice %82 {offsets = [0, 1], sizes = [8, 1], strides = [1, 1]} : vector<8x32xf32> to vector<8x1xf32>
    %98 = arith.mulf %94, %96 : vector<8x1xf32>
    %99 = arith.mulf %95, %97 : vector<8x1xf32>
    %100 = arith.subf %98, %99 : vector<8x1xf32>
    %101 = arith.mulf %95, %96 : vector<8x1xf32>
    %102 = arith.mulf %94, %97 : vector<8x1xf32>
    %103 = arith.addf %101, %102 : vector<8x1xf32>
    %c0_i32_24 = arith.constant 0 : i32
    %104 = vector.broadcast %c0_i32_24 : i32 to vector<8x32xi32>
    %105 = arith.cmpi eq, %51, %104 : vector<8x32xi32>
    %c1_i32_25 = arith.constant 1 : i32
    %106 = vector.broadcast %c1_i32_25 : i32 to vector<8x32xi32>
    %107 = arith.cmpi eq, %51, %106 : vector<8x32xi32>
    %108 = vector.shape_cast %103 : vector<8x1xf32> to vector<8x1xf32>
    %109 = vector.broadcast %108 : vector<8x1xf32> to vector<8x32xf32>
    %110 = arith.select %107, %109, %82 : vector<8x32xi1>, vector<8x32xf32>
    %111 = vector.shape_cast %100 : vector<8x1xf32> to vector<8x1xf32>
    %112 = vector.broadcast %111 : vector<8x1xf32> to vector<8x32xf32>
    %113 = arith.select %105, %112, %110 : vector<8x32xi1>, vector<8x32xf32>
    %114 = arith.truncf %113 : vector<8x32xf32> to vector<8x32xbf16>
    %c0_26 = arith.constant 0 : index
    %c0_27 = arith.constant 0 : index
    %115 = vector.load %arg4[%c0_26, %c0_27] : memref<32x32xf32, #tpu.memory_space<vmem>>, vector<32x32xf32>
    %116 = arith.truncf %115 : vector<32x32xf32> to vector<32x32xbf16>
    %cst_28 = arith.constant dense<0.000000e+00> : vector<8x32xf32>
    %117 = tpu.matmul %114, %116, %cst_28 {dimension_numbers = #tpu.dot_dimension_numbers<[1], [0], [0], [1], [0, 0, 1, 1], [], []>} : vector<8x32xbf16>, vector<32x32xbf16>, vector<8x32xf32> -> vector<8x32xf32>
    %118 = vector.broadcast %4 : vector<1x32xf32> to vector<8x32xf32>
    %119 = arith.addf %117, %118 : vector<8x32xf32>
    %cst_29 = arith.constant 0.000000e+00 : f32
    %120 = vector.broadcast %cst_29 : f32 to vector<8x32xf32>
    %121 = arith.maximumf %119, %120 : vector<8x32xf32>
    %122 = arith.truncf %121 : vector<8x32xf32> to vector<8x32xbf16>
    %c0_30 = arith.constant 0 : index
    %c0_31 = arith.constant 0 : index
    %123 = vector.load %arg5[%c0_30, %c0_31] : memref<32x128xf32, #tpu.memory_space<vmem>>, vector<32x128xf32>
    %124 = arith.truncf %123 : vector<32x128xf32> to vector<32x128xbf16>
    %cst_32 = arith.constant dense<0.000000e+00> : vector<8x128xf32>
    %125 = tpu.matmul %122, %124, %cst_32 {dimension_numbers = #tpu.dot_dimension_numbers<[1], [0], [0], [1], [0, 0, 1, 1], [], []>} : vector<8x32xbf16>, vector<32x128xbf16>, vector<8x128xf32> -> vector<8x128xf32>
    %c0_33 = arith.constant 0 : index
    %c0_34 = arith.constant 0 : index
    %126 = vector.load %arg6[%c0_33, %c0_34] : memref<1x128xf32, #tpu.memory_space<vmem>>, vector<1x128xf32>
    %127 = vector.broadcast %126 : vector<1x128xf32> to vector<8x128xf32>
    %128 = arith.addf %125, %127 : vector<8x128xf32>
    %cst_35 = arith.constant dense<0xFF800000> : vector<8xf32>
    %129 = vector.multi_reduction <maximumf>, %128, %cst_35 [1] : vector<8x128xf32> to vector<8xf32>
    %130 = vector.shape_cast %129 : vector<8xf32> to vector<8x1xf32>
    %131 = vector.broadcast %130 : vector<8x1xf32> to vector<8x128xf32>
    %132 = arith.subf %128, %131 : vector<8x128xf32>
    %133 = math.exp %132 : vector<8x128xf32>
    %cst_36 = arith.constant dense<0.000000e+00> : vector<8xf32>
    %134 = vector.multi_reduction <add>, %133, %cst_36 [1] : vector<8x128xf32> to vector<8xf32>
    %135 = vector.shape_cast %134 : vector<8xf32> to vector<8x1xf32>
    %136 = math.log %135 : vector<8x1xf32>
    %137 = vector.broadcast %136 : vector<8x1xf32> to vector<8x128xf32>
    %138 = arith.subf %132, %137 : vector<8x128xf32>
    %c0_37 = arith.constant 0 : index
    %c0_38 = arith.constant 0 : index
    %139 = vector.load %arg7[%c0_37, %c0_38] : memref<8x128xf32, #tpu.memory_space<vmem>>, vector<8x128xf32>
    tpu.vector_store %arg7[%c0_37, %c0_38], %138 {strides = array<i32>} : memref<8x128xf32, #tpu.memory_space<vmem>>, vector<8x128xf32>,
    return
  }
}

</mosaic_0001>

<llo_original>
// kernel: tpu_custom_call.1
$region0: #{tpu_custom_call.1}
  #allocation0 [shape = 'u32[]', space=smem, size = 0x4, offset = 0x4, fixed_abs, tag = 'smem constant byte address 0x4 - core index']
  #allocation1 [shape = 'u32[144,128]{1,0:T(1,128)}', space=vmem, size = 0x12000, scoped, tag = 'internal scratch']
  %s0 = inlined_call_operand.hbm [shape: f32[8,16], index: 0, kind: input, shape index: {}]
  %s1 = inlined_call_operand.hbm [shape: f32[8,8], index: 1, kind: input, shape index: {}]
  %s2 = inlined_call_operand.hbm [shape: f32[16,32], index: 2, kind: input, shape index: {}]
  %s3 = inlined_call_operand.hbm [shape: f32[8,32], index: 3, kind: input, shape index: {}]
  %s4 = inlined_call_operand.hbm [shape: f32[32,32], index: 4, kind: input, shape index: {}]
  %s5 = inlined_call_operand.hbm [shape: f32[32,128], index: 5, kind: input, shape index: {}]
  %s6 = inlined_call_operand.vmem [shape: f32[1,128], index: 6, kind: input, shape index: {}]
  %s7 = inlined_call_operand.hbm [shape: f32[8,128], index: 7, kind: output, shape index: {}]
  %s8 = sld [smem:[#allocation0]]
  $region62: #{tpu_custom_call.1} parent=0
    _
  %s10 = ssub.s32 1, %s8
  %s11 = scalar_select 0, %s10, %s8
  $region1: #{tpu_custom_call.1} parent=0
    #allocation2 [shape = 'u8[4096]{0}', space=vmem, size = 0x1000, scoped, tag = 'input window, operand 0, single buffered']
    #allocation3 [shape = 's32[1]{0}', space=sflag, size = 0x4, scoped, tag = 'scoped memory for tpu_custom_call.1']
    #allocation4 [shape = 's32[1]{0}', space=sflag, size = 0x4, scoped, tag = 'scoped memory for tpu_custom_call.1']
    #allocation5 [shape = 'u8[4096]{0}', space=vmem, size = 0x1000, scoped, tag = 'input window, operand 1, single buffered']
    #allocation6 [shape = 's32[1]{0}', space=sflag, size = 0x4, scoped, tag = 'scoped memory for tpu_custom_call.1']
    #allocation7 [shape = 'u8[8192]{0}', space=vmem, size = 0x2000, scoped, tag = 'input window, operand 2, single buffered']
    #allocation8 [shape = 'u8[4096]{0}', space=vmem, size = 0x1000, scoped, tag = 'input window, operand 3, single buffered']
    #allocation9 [shape = 's32[1]{0}', space=sflag, size = 0x4, scoped, tag = 'scoped memory for tpu_custom_call.1']
    #allocation10 [shape = 'u8[16384]{0}', space=vmem, size = 0x4000, scoped, tag = 'input window, operand 4, single buffered']
    #allocation11 [shape = 'u8[16384]{0}', space=vmem, size = 0x4000, scoped, tag = 'input window, operand 5, single buffered']
    #allocation12 [shape = 's32[1]{0}', space=sflag, size = 0x4, scoped, tag = 'scoped memory for tpu_custom_call.1']
    #allocation13 [shape = 'u8[4096]{0}', space=vmem, size = 0x1000, scoped, tag = 'output window, operand 0, single buffered']
    %12 = vsyncpa [#allocation3], 0
    %13 = vsyncpa [#allocation6], 0
    %14 = vsyncpa [#allocation9], 0
    %15 = vsyncpa [#allocation12], 0
    %16 = vsyncpa [#allocation4], 0
    // Predicated region
    $region2: #{tpu_custom_call.1} parent=1 // pred_check
      _
    $region3: #{tpu_custom_call.1} parent=1 // pred_check_branch
      %18 = sbr.rel (0) target = $region5
    $region4: #{tpu_custom_call.1} parent=1 // pred_region
      %s20 = ssub.s32 128, 128
      %21 = vsyncadd [#allocation3], %s20
      %s23 = sshll.u32 [#allocation2], 4
      %s24 = int_to_ptr.vmem [resolvable:$true] %s23
      %26 = dma.hbm_to_vmem [thread:$0]  %s0, 128, %s24, [#allocation3]
    $region5: #{tpu_custom_call.1} parent=1 // pred_fallthru
      _
    // Predicated region
    $region6: #{tpu_custom_call.1} parent=1 // pred_check
      _
    $region7: #{tpu_custom_call.1} parent=1 // pred_check_branch
      %28 = sbr.rel (0) target = $region9
    $region8: #{tpu_custom_call.1} parent=1 // pred_region
      %s30 = ssub.s32 128, 128
      %31 = vsyncadd [#allocation6], %s30
      %s33 = sshll.u32 [#allocation5], 4
      %s34 = int_to_ptr.vmem [resolvable:$true] %s33
      %36 = dma.hbm_to_vmem [thread:$0]  %s1, 128, %s34, [#allocation6]
    $region9: #{tpu_custom_call.1} parent=1 // pred_fallthru
      _
    // Predicated region
    $region10: #{tpu_custom_call.1} parent=1 // pred_check
      _
    $region11: #{tpu_custom_call.1} parent=1 // pred_check_branch
      %38 = sbr.rel (0) target = $region13
    $region12: #{tpu_custom_call.1} parent=1 // pred_region
      %s40 = ssub.s32 256, 256
      %41 = vsyncadd [#allocation6], %s40
      %s42 = sshll.u32 [#allocation7], 4
      %s43 = int_to_ptr.vmem [resolvable:$true] %s42
      %48 = dma.hbm_to_vmem [thread:$0]  %s2, 256, %s43, [#allocation6], 128, 128, 8
    $region13: #{tpu_custom_call.1} parent=1 // pred_fallthru
      _
    // Predicated region
    $region14: #{tpu_custom_call.1} parent=1 // pred_check
      _
    $region15: #{tpu_custom_call.1} parent=1 // pred_check_branch
      %50 = sbr.rel (0) target = $region17
    $region16: #{tpu_custom_call.1} parent=1 // pred_region
      %s52 = ssub.s32 128, 128
      %53 = vsyncadd [#allocation9], %s52
      %s55 = sshll.u32 [#allocation8], 4
      %s56 = int_to_ptr.vmem [resolvable:$true] %s55
      %58 = dma.hbm_to_vmem [thread:$0]  %s3, 128, %s56, [#allocation9]
    $region17: #{tpu_custom_call.1} parent=1 // pred_fallthru
      _
    // Predicated region
    $region18: #{tpu_custom_call.1} parent=1 // pred_check
      _
    $region19: #{tpu_custom_call.1} parent=1 // pred_check_branch
      %60 = sbr.rel (0) target = $region21
    $region20: #{tpu_custom_call.1} parent=1 // pred_region
      %s62 = ssub.s32 512, 512
      %63 = vsyncadd [#allocation9], %s62
      %s64 = sshll.u32 [#allocation10], 4
      %s65 = int_to_ptr.vmem [resolvable:$true] %s64
      %70 = dma.hbm_to_vmem [thread:$0]  %s4, 512, %s65, [#allocation9], 128, 128, 8
    $region21: #{tpu_custom_call.1} parent=1 // pred_fallthru
      _
    // Predicated region
    $region22: #{tpu_custom_call.1} parent=1 // pred_check
      _
    $region23: #{tpu_custom_call.1} parent=1 // pred_check_branch
      %72 = sbr.rel (0) target = $region25
    $region24: #{tpu_custom_call.1} parent=1 // pred_region
      %s74 = ssub.s32 512, 512
      %75 = vsyncadd [#allocation12], %s74
      %s76 = sshll.u32 [#allocation11], 4
      %s77 = int_to_ptr.vmem [resolvable:$true] %s76
      %82 = dma.hbm_to_vmem [thread:$0]  %s5, 512, %s77, [#allocation12], 128, 128, 8
    $region25: #{tpu_custom_call.1} parent=1 // pred_fallthru
      _
    // Predicated region
    $region26: #{tpu_custom_call.1} parent=1 // pred_check
      _
    $region27: #{tpu_custom_call.1} parent=1 // pred_check_branch
      %84 = sbr.rel (0) target = $region29
    $region28: #{tpu_custom_call.1} parent=1 // pred_region
      _
    $region29: #{tpu_custom_call.1} parent=1 // pred_fallthru
      _
    // Predicated region
    $region30: #{tpu_custom_call.1} parent=1 // pred_check
      _
    $region31: #{tpu_custom_call.1} parent=1 // pred_check_branch
      %86 = sbr.rel (0) target = $region33
    $region32: #{tpu_custom_call.1} parent=1 // pred_region
      %87 = dma.done [#allocation3], 128
    $region33: #{tpu_custom_call.1} parent=1 // pred_fallthru
      _
    // Predicated region
    $region34: #{tpu_custom_call.1} parent=1 // pred_check
      _
    $region35: #{tpu_custom_call.1} parent=1 // pred_check_branch
      %89 = sbr.rel (0) target = $region37
    $region36: #{tpu_custom_call.1} parent=1 // pred_region
      %90 = dma.done [#allocation6], 128
    $region37: #{tpu_custom_call.1} parent=1 // pred_fallthru
      _
    // Predicated region
    $region38: #{tpu_custom_call.1} parent=1 // pred_check
      _
    $region39: #{tpu_custom_call.1} parent=1 // pred_check_branch
      %92 = sbr.rel (0) target = $region41
    $region40: #{tpu_custom_call.1} parent=1 // pred_region
      %93 = dma.done [#allocation6], 256
    $region41: #{tpu_custom_call.1} parent=1 // pred_fallthru
      _
    // Predicated region
    $region42: #{tpu_custom_call.1} parent=1 // pred_check
      _
    $region43: #{tpu_custom_call.1} parent=1 // pred_check_branch
      %95 = sbr.rel (0) target = $region45
    $region44: #{tpu_custom_call.1} parent=1 // pred_region
      %96 = dma.done [#allocation9], 128
    $region45: #{tpu_custom_call.1} parent=1 // pred_fallthru
      _
    // Predicated region
    $region46: #{tpu_custom_call.1} parent=1 // pred_check
      _
    $region47: #{tpu_custom_call.1} parent=1 // pred_check_branch
      %98 = sbr.rel (0) target = $region49
    $region48: #{tpu_custom_call.1} parent=1 // pred_region
      %99 = dma.done [#allocation9], 512
    $region49: #{tpu_custom_call.1} parent=1 // pred_fallthru
      _
    // Predicated region
    $region50: #{tpu_custom_call.1} parent=1 // pred_check
      _
    $region51: #{tpu_custom_call.1} parent=1 // pred_check_branch
      %101 = sbr.rel (0) target = $region53
    $region52: #{tpu_custom_call.1} parent=1 // pred_region
      %102 = dma.done [#allocation12], 512
    $region53: #{tpu_custom_call.1} parent=1 // pred_fallthru
      _
    %v104 = vld [vmem:[#allocation8] sm:$0xff]
    %v105 = vld [vmem:[#allocation2] sm:$0xff]
    %v106 = vpack.c.bf16 %v105, %v105
    %v107 = vld [vmem:[#allocation7] sm:$0xff]
    %v108 = vld [vmem:[#allocation7 + $0x8] sm:$0xff]
    %v109 = vpack.c.bf16 %v108, %v107
    %v110 = vlaneseq
    %v111 = vshrl.u32 %v110, 7
    %v112 = vsub.s32 0, %v111
    %v113 = vrot.slane %v104, %v112
    %vm114 = vcmask 130048
    %v116 = vsel %vm114, %v106, 0
    %118 = vmatprep.subr.bf16.mxu0 0
    %119 = vmatpush1.bf16.msra.mxu0 0
    %120 = vmatprep.subr.bf16.mxu0 0
    %121 = vmatpush1.bf16.msra.mxu0 0
    %122 = vmatprep.subr.bf16.mxu0 0
    %123 = vmatpush1.bf16.msra.mxu0 0
    %124 = vmatprep.subr.bf16.mxu0 0
    %125 = vmatpush1.bf16.msra.mxu0 0
    %126 = vmatprep.subr.bf16.mxu0 0
    %127 = vmatpush1.bf16.msra.mxu0 0
    %128 = vmatprep.subr.bf16.mxu0 0
    %129 = vmatpush1.bf16.msra.mxu0 0
    %130 = vmatprep.subr.bf16.mxu0 0
    %131 = vmatpush1.bf16.msra.mxu0 0
    %132 = vmatprep.subr.bf16.mxu0 0
    %133 = vmatpush1.bf16.msra.mxu0 %v109
    %134 = vmatprep.subr.bf16.mxu0 0
    %135 = vmatpush2.bf16.msra.mxu0 0
    %136 = vmatprep.subr.bf16.mxu0 0
    %137 = vmatpush2.bf16.msra.mxu0 0
    %138 = vmatprep.subr.bf16.mxu0 0
    %139 = vmatpush2.bf16.msra.mxu0 0
    %140 = vmatprep.subr.bf16.mxu0 0
    %141 = vmatpush2.bf16.msra.mxu0 0
    %142 = vmatprep.subr.bf16.mxu0 0
    %143 = vmatpush2.bf16.msra.mxu0 0
    %144 = vmatprep.subr.bf16.mxu0 0
    %145 = vmatpush2.bf16.msra.mxu0 0
    %146 = vmatprep.subr.bf16.mxu0 0
    %147 = vmatpush2.bf16.msra.mxu0 0
    %148 = vmatprep.subr.bf16.mxu0 0
    %149 = vmatpush2.bf16.msra.mxu0 0
    %150 = vmatprep.mubr.bf16.mxu0 0
    %151 = vmatmul.mubr.bf16.gmra.mxu0 %v116
    %v152 = vpop.f32.mrf.mxu0
    %v153 = vadd.f32 %v113, %v152
    %v154 = vpop.f32.mrf.mxu0
    %v155 = vpop.f32.mrf.mxu0
    %v156 = vpop.f32.mrf.mxu0
    %157 = vdwg.mxu0
    %v158 = vmax.f32 %v153, 0.0
    %vm159 = vcmask 261120
    %v160 = vsel %vm159, %v158, 0.0
    %161 = vadd.xlane.f32.xlu0 %v160
    %v162 = vpop.xlane.xlu0 %161
    %v163 = vrcp.pop 32.0
    %v164 = vmul.f32 %v162, %v163
    %v165 = vsub.f32 %v158, %v164
    %v166 = vmul.f32 %v165, %v165
    %v167 = vsel %vm159, %v166, 0.0
    %168 = vadd.xlane.f32.xlu0 %v167
    %v169 = vpop.xlane.xlu0 %168
    %v170 = vmul.f32 %v169, %v163
    %v171 = vadd.f32 %v170, 1e-05
    %v172 = vrsqrt.pop %v171
    %v173 = vmul.f32 %v165, %v172
    %v174 = vlaneseq
    %v175 = vshrl.u32 %v174, 7
    %v176 = vsub.s32 1, %v175
    %v177 = vrot.slane %v104, %v176
    %v178 = vmul.f32 %v173, %v177
    %v179 = vlaneseq
    %v180 = vshrl.u32 %v179, 7
    %v181 = vsub.s32 2, %v180
    %v182 = vrot.slane %v104, %v181
    %v183 = vadd.f32 %v178, %v182
    %v184 = vld [vmem:[#allocation5] sm:$0xff]
    %vm185 = vcmask 64512
    %v186 = vsel %vm185, %v184, 0.0
    %187 = vadd.xlane.f32.xlu0 %v186
    %v188 = vpop.xlane.xlu0 %187
    %vm189 = vcmp.gt.f32.partialorder %v188, 0.0
    %v190 = vrsqrt.pop %v188
    %v191 = vsel %vm189, %v190, 0.0
    %v192 = vpack.c.bf16 %v184, %v184
    %v193 = vmul.f32 %v183, %v183
    %v194 = vsel %vm159, %v193, 0.0
    %195 = vadd.xlane.f32.xlu0 %v194
    %v196 = vpop.xlane.xlu0 %195
    %v197 = vadd.f32 %v196, 1e-08
    %v198 = vrsqrt.pop %v197
    %v199 = vlaneseq
    %v200 = vand.u32 %v199, 127
    %v201 = vmul.f32 %v183, %v198
    %v202 = vmul.f32 %v201, %v191
    %v203 = vpack.c.bf16 %v202, %v202
    %v205 = vsel %vm185, %v192, 0
    %vm207 = vcmask 1043456
    %v209 = vsel %vm207, %v203, 0
    %211 = vmatprep.subr.bf16.mxu0 0
    %212 = vmatpush1.bf16.msra.mxu0 0
    %213 = vmatprep.subr.bf16.mxu0 0
    %214 = vmatpush1.bf16.msra.mxu0 0
    %215 = vmatprep.subr.bf16.mxu0 0
    %216 = vmatpush1.bf16.msra.mxu0 0
    %217 = vmatprep.subr.bf16.mxu0 0
    %218 = vmatpush1.bf16.msra.mxu0 0
    %219 = vmatprep.subr.bf16.mxu0 0
    %220 = vmatpush1.bf16.msra.mxu0 0
    %221 = vmatprep.subr.bf16.mxu0 0
    %222 = vmatpush1.bf16.msra.mxu0 0
    %223 = vmatprep.subr.bf16.mxu0 0
    %224 = vmatpush1.bf16.msra.mxu0 0
    %225 = vmatprep.subr.bf16.mxu0 0
    %226 = vmatpush1.bf16.msra.mxu0 %v209
    %227 = vmatprep.subr.bf16.mxu0 0
    %228 = vmatpush2.bf16.msra.mxu0 0
    %229 = vmatprep.subr.bf16.mxu0 0
    %230 = vmatpush2.bf16.msra.mxu0 0
    %231 = vmatprep.subr.bf16.mxu0 0
    %232 = vmatpush2.bf16.msra.mxu0 0
    %233 = vmatprep.subr.bf16.mxu0 0
    %234 = vmatpush2.bf16.msra.mxu0 0
    %235 = vmatprep.subr.bf16.mxu0 0
    %236 = vmatpush2.bf16.msra.mxu0 0
    %237 = vmatprep.subr.bf16.mxu0 0
    %238 = vmatpush2.bf16.msra.mxu0 0
    %239 = vmatprep.subr.bf16.mxu0 0
    %240 = vmatpush2.bf16.msra.mxu0 0
    %241 = vmatprep.subr.bf16.mxu0 0
    %242 = vmatpush2.bf16.msra.mxu0 0
    %243 = vmatprep.mubr.bf16.mxu0 0
    %244 = vmatmul.mubr.bf16.gmra.mxu0 %v205
    %v245 = vpop.f32.mrf.mxu0
    %v246 = vadd.f32 0.0, %v245
    %v247 = vpop.f32.mrf.mxu0
    %v248 = vpop.f32.mrf.mxu0
    %v249 = vpop.f32.mrf.mxu0
    %250 = vdwg.mxu0
    %v251 = vmul.f32 %v191, %v246
    %v252 = vmul.f32 %v201, %v251
    %v253 = vsel %vm159, %v252, 0.0
    %254 = vadd.xlane.f32.xlu0 %v253
    %v255 = vpop.xlane.xlu0 %254
    %v256 = vand.u32 2147483647, %v255
    %vm257 = vcmp.le.f32.partialorder %v256, 0.7853982
    %vm258 = vcmp.lt.s32.totalorder %v255, 0
    %v259 = vand.u32 %v255, 2139095040
    %v260 = vshrl.u32 %v259, 23
    %v261 = vsub.s32 %v260, 127
    %v262 = vand.u32 2147483647, %v255
    %v263 = vand.u32 %v262, 8388607
    %v264 = vor.u32 %v263, 8388608
    %v265 = vsub.s32 0, %v264
    %v266 = vadd.s32 %v261, 1
    %vm267 = vcmp.gt.s32.totalorder %v266, 0
    %v268 = vsel %vm267, %v266, 0
    %v269 = vshrl.u32 %v268, 5
    %v270 = vand.u32 %v268, 31
    %v271 = vsub.s32 32, %v270
    %v272 = vshrl.u32 683565275, %v271
    %v273 = vshll.u32 683565275, %v270
    %v274 = vshrl.u32 2475754826, %v271
    %v275 = vor.u32 %v273, %v274
    %v276 = vshll.u32 2475754826, %v270
    %v277 = vshrl.u32 2131351028, %v271
    %v278 = vor.u32 %v276, %v277
    %v279 = vshll.u32 2131351028, %v270
    %v280 = vshrl.u32 2102212464, %v271
    %v281 = vor.u32 %v279, %v280
    %v282 = vshll.u32 2102212464, %v270
    %v283 = vshrl.u32 920167782, %v271
    %v284 = vor.u32 %v282, %v283
    %v285 = vshll.u32 920167782, %v270
    %v286 = vshrl.u32 1326507024, %v271
    %v287 = vor.u32 %v285, %v286
    %vm288 = vcmp.lt.s32.totalorder %v269, 1
    %vm289 = vcmp.lt.s32.totalorder %v269, 2
    %vm290 = vcmp.lt.s32.totalorder %v269, 3
    %vm291 = vcmp.lt.s32.totalorder %v269, 4
    %v292 = vsel %vm288, %v272, %v275
    %v293 = vsel %vm291, %v281, 2102212464
    %v294 = vsel %vm290, %v278, %v293
    %v295 = vsel %vm289, %v292, %v294
    %v296 = vsel %vm288, %v275, %v278
    %v297 = vsel %vm291, %v284, 920167782
    %v298 = vsel %vm290, %v281, %v297
    %v299 = vsel %vm289, %v296, %v298
    %v300 = vsel %vm288, %v278, %v281
    %v301 = vsel %vm291, %v287, 1326507024
    %v302 = vsel %vm290, %v284, %v301
    %v303 = vsel %vm289, %v300, %v302
    %v304 = vshll.u32 %v264, 8
    %v305 = vmul.u32.u64.compose %v304, %v303
    %v306 = vextract.low.u32 %v305
    %v307 = vextract.high.u32 %v305
    %v308 = vmul.u32.u64.compose %v304, %v299
    %v309 = vextract.low.u32 %v308
    %v310 = vextract.high.u32 %v308
    %v311 = vmul.u32 %v304, %v295
    %v312 = vadd.s32 %v307, %v309
    %vm313 = vc.u32 %v307, %v309
    %v314 = vadd.s32 %v310, 1
    %v315 = vsel %vm313, %v314, %v310
    %v316 = vadd.s32 %v311, %v315
    %v317 = vadd.s32 %v316, 536870912
    %v318 = vshrl.u32 %v317, 30
    %v319 = vshll.u32 %v318, 30
    %v320 = vsub.s32 %v316, %v319
    %vm321 = vcmp.lt.s32.totalorder %v320, 0
    %v322 = vsub.s32 0, %v320
    %v323 = vsel %vm321, %v322, %v320
    %v324 = vclz %v323
    %v325 = vsub.s32 %v324, 2
    %vm326 = vcmp.gt.s32.totalorder 0, %v325
    %v327 = vsel %vm326, 0, %v325
    %v328 = vsub.s32 32, %v327
    %v329 = vshll.u32 %v320, %v327
    %v330 = vshrl.u32 %v312, %v328
    %v331 = vor.u32 %v329, %v330
    %v332 = vsub.s32 4294967266, %v327
    %v333 = vadd.s32 %v332, 127
    %v334 = vshll.u32 %v333, 23
    %v335 = vor.u32 4788187, %v334
    %v336 = vand.u32 2147483647, %v335
    %v338 = vcvt.s32.f32 %v331
    %v339 = vmul.f32 %v338, %v336
    %v340 = vxor.u32 %v339, 2147483648
    %v341 = vsel %vm258, %v340, %v339
    %v342 = vsub.s32 4, %v318
    %v343 = vsel %vm258, %v342, %v318
    %v344 = vsel %vm257, %v255, %v341
    %v345 = vsel %vm257, 0, %v343
    %v346 = vcosq.f32.pop %v344
    %v347 = vsinq.f32.pop %v344
    %vm348 = vweird.f32 %v255
    %v349 = vand.u32 %v345, 3
    %vm350 = vcmp.lt.s32.totalorder %v349, 2
    %vm351 = vcmp.eq.s32.totalorder %v349, 0
    %v352 = vxor.u32 %v347, 2147483648
    %v353 = vsel %vm351, %v346, %v352
    %vm354 = vcmp.eq.s32.totalorder %v349, 2
    %v355 = vxor.u32 %v346, 2147483648
    %v356 = vsel %vm354, %v355, %v347
    %v357 = vsel %vm350, %v353, %v356
    %v358 = vsel %vm348, nan, %v357
    %v359 = vand.u32 2147483647, %v255
    %vm360 = vcmp.le.f32.partialorder %v359, 0.7853982
    %vm361 = vcmp.lt.s32.totalorder %v255, 0
    %v362 = vand.u32 %v255, 2139095040
    %v363 = vshrl.u32 %v362, 23
    %v364 = vsub.s32 %v363, 127
    %v365 = vand.u32 2147483647, %v255
    %v366 = vand.u32 %v365, 8388607
    %v367 = vor.u32 %v366, 8388608
    %v368 = vsub.s32 0, %v367
    %v369 = vadd.s32 %v364, 1
    %vm370 = vcmp.gt.s32.totalorder %v369, 0
    %v371 = vsel %vm370, %v369, 0
    %v372 = vshrl.u32 %v371, 5
    %v373 = vand.u32 %v371, 31
    %v374 = vsub.s32 32, %v373
    %v375 = vshrl.u32 683565275, %v374
    %v376 = vshll.u32 683565275, %v373
    %v377 = vshrl.u32 2475754826, %v374
    %v378 = vor.u32 %v376, %v377
    %v379 = vshll.u32 2475754826, %v373
    %v380 = vshrl.u32 2131351028, %v374
    %v381 = vor.u32 %v379, %v380
    %v382 = vshll.u32 2131351028, %v373
    %v383 = vshrl.u32 2102212464, %v374
    %v384 = vor.u32 %v382, %v383
    %v385 = vshll.u32 2102212464, %v373
    %v386 = vshrl.u32 920167782, %v374
    %v387 = vor.u32 %v385, %v386
    %v388 = vshll.u32 920167782, %v373
    %v389 = vshrl.u32 1326507024, %v374
    %v390 = vor.u32 %v388, %v389
    %vm391 = vcmp.lt.s32.totalorder %v372, 1
    %vm392 = vcmp.lt.s32.totalorder %v372, 2
    %vm393 = vcmp.lt.s32.totalorder %v372, 3
    %vm394 = vcmp.lt.s32.totalorder %v372, 4
    %v395 = vsel %vm391, %v375, %v378
    %v396 = vsel %vm394, %v384, 2102212464
    %v397 = vsel %vm393, %v381, %v396
    %v398 = vsel %vm392, %v395, %v397
    %v399 = vsel %vm391, %v378, %v381
    %v400 = vsel %vm394, %v387, 920167782
    %v401 = vsel %vm393, %v384, %v400
    %v402 = vsel %vm392, %v399, %v401
    %v403 = vsel %vm391, %v381, %v384
    %v404 = vsel %vm394, %v390, 1326507024
    %v405 = vsel %vm393, %v387, %v404
    %v406 = vsel %vm392, %v403, %v405
    %v407 = vshll.u32 %v367, 8
    %v408 = vmul.u32.u64.compose %v407, %v406
    %v409 = vextract.low.u32 %v408
    %v410 = vextract.high.u32 %v408
    %v411 = vmul.u32.u64.compose %v407, %v402
    %v412 = vextract.low.u32 %v411
    %v413 = vextract.high.u32 %v411
    %v414 = vmul.u32 %v407, %v398
    %v415 = vadd.s32 %v410, %v412
    %vm416 = vc.u32 %v410, %v412
    %v417 = vadd.s32 %v413, 1
    %v418 = vsel %vm416, %v417, %v413
    %v419 = vadd.s32 %v414, %v418
    %v420 = vadd.s32 %v419, 536870912
    %v421 = vshrl.u32 %v420, 30
    %v422 = vshll.u32 %v421, 30
    %v423 = vsub.s32 %v419, %v422
    %vm424 = vcmp.lt.s32.totalorder %v423, 0
    %v425 = vsub.s32 0, %v423
    %v426 = vsel %vm424, %v425, %v423
    %v427 = vclz %v426
    %v428 = vsub.s32 %v427, 2
    %vm429 = vcmp.gt.s32.totalorder 0, %v428
    %v430 = vsel %vm429, 0, %v428
    %v431 = vsub.s32 32, %v430
    %v432 = vshll.u32 %v423, %v430
    %v433 = vshrl.u32 %v415, %v431
    %v434 = vor.u32 %v432, %v433
    %v435 = vsub.s32 4294967266, %v430
    %v436 = vadd.s32 %v435, 127
    %v437 = vshll.u32 %v436, 23
    %v438 = vor.u32 4788187, %v437
    %v439 = vand.u32 2147483647, %v438
    %v441 = vcvt.s32.f32 %v434
    %v442 = vmul.f32 %v441, %v439
    %v443 = vxor.u32 %v442, 2147483648
    %v444 = vsel %vm361, %v443, %v442
    %v445 = vsub.s32 4, %v421
    %v446 = vsel %vm361, %v445, %v421
    %v447 = vsel %vm360, %v255, %v444
    %v448 = vsel %vm360, 0, %v446
    %v449 = vcosq.f32.pop %v447
    %v450 = vsinq.f32.pop %v447
    %vm451 = vweird.f32 %v255
    %v452 = vadd.s32 %v448, 3
    %v453 = vand.u32 %v452, 3
    %vm454 = vcmp.lt.s32.totalorder %v453, 2
    %vm455 = vcmp.eq.s32.totalorder %v453, 0
    %v456 = vxor.u32 %v450, 2147483648
    %v457 = vsel %vm455, %v449, %v456
    %vm458 = vcmp.eq.s32.totalorder %v453, 2
    %v459 = vxor.u32 %v449, 2147483648
    %v460 = vsel %vm458, %v459, %v450
    %v461 = vsel %vm454, %v457, %v460
    %v462 = vsel %vm451, nan, %v461
    %v463 = vmul.f32 %v358, %v183
    %v464 = vmul.f32 %v462, %v183
    %466 = vrot.lane.b32.xlu0 %v464, 127
    %v467 = vpop.permute.xlu0 %466
    %v469 = vsub.f32 %v463, %v467
    %471 = vrot.lane.b32.xlu0 %v463, 127
    %v472 = vpop.permute.xlu0 %471
    %v474 = vadd.f32 %v464, %v472
    %vm475 = vcmp.eq.s32.totalorder %v200, 0
    %vm476 = vcmp.eq.s32.totalorder %v200, 1
    %478 = vset.pattern.permute.xlu0 0
    %479 = vperm.xlu0 %478, %v474
    %v480 = vpop.permute.xlu0 %479
    %v482 = vsel %vm476, %v480, %v183
    %484 = vset.pattern.permute.xlu0 0
    %485 = vperm.xlu0 %484, %v469
    %v486 = vpop.permute.xlu0 %485
    %v488 = vsel %vm475, %v486, %v482
    %v489 = vmul.f32 %v488, %v198
    %v490 = vmul.f32 %v489, %v191
    %v491 = vpack.c.bf16 %v490, %v490
    %v493 = vsel %vm207, %v491, 0
    %495 = vmatprep.subr.bf16.mxu0 0
    %496 = vmatpush1.bf16.msra.mxu0 0
    %497 = vmatprep.subr.bf16.mxu0 0
    %498 = vmatpush1.bf16.msra.mxu0 0
    %499 = vmatprep.subr.bf16.mxu0 0
    %500 = vmatpush1.bf16.msra.mxu0 0
    %501 = vmatprep.subr.bf16.mxu0 0
    %502 = vmatpush1.bf16.msra.mxu0 0
    %503 = vmatprep.subr.bf16.mxu0 0
    %504 = vmatpush1.bf16.msra.mxu0 0
    %505 = vmatprep.subr.bf16.mxu0 0
    %506 = vmatpush1.bf16.msra.mxu0 0
    %507 = vmatprep.subr.bf16.mxu0 0
    %508 = vmatpush1.bf16.msra.mxu0 0
    %509 = vmatprep.subr.bf16.mxu0 0
    %510 = vmatpush1.bf16.msra.mxu0 %v493
    %511 = vmatprep.subr.bf16.mxu0 0
    %512 = vmatpush2.bf16.msra.mxu0 0
    %513 = vmatprep.subr.bf16.mxu0 0
    %514 = vmatpush2.bf16.msra.mxu0 0
    %515 = vmatprep.subr.bf16.mxu0 0
    %516 = vmatpush2.bf16.msra.mxu0 0
    %517 = vmatprep.subr.bf16.mxu0 0
    %518 = vmatpush2.bf16.msra.mxu0 0
    %519 = vmatprep.subr.bf16.mxu0 0
    %520 = vmatpush2.bf16.msra.mxu0 0
    %521 = vmatprep.subr.bf16.mxu0 0
    %522 = vmatpush2.bf16.msra.mxu0 0
    %523 = vmatprep.subr.bf16.mxu0 0
    %524 = vmatpush2.bf16.msra.mxu0 0
    %525 = vmatprep.subr.bf16.mxu0 0
    %526 = vmatpush2.bf16.msra.mxu0 0
    %527 = vmatprep.mubr.bf16.mxu0 0
    %528 = vmatmul.mubr.bf16.gmra.mxu0 %v205
    %v529 = vpop.f32.mrf.mxu0
    %v530 = vadd.f32 0.0, %v529
    %v531 = vpop.f32.mrf.mxu0
    %v532 = vpop.f32.mrf.mxu0
    %v533 = vpop.f32.mrf.mxu0
    %534 = vdwg.mxu0
    %v535 = vmul.f32 %v191, %v530
    %v536 = vmul.f32 %v489, %v535
    %v537 = vsel %vm159, %v536, 0.0
    %538 = vadd.xlane.f32.xlu0 %v537
    %v539 = vpop.xlane.xlu0 %538
    %v540 = vand.u32 2147483647, %v539
    %vm541 = vcmp.le.f32.partialorder %v540, 0.7853982
    %vm542 = vcmp.lt.s32.totalorder %v539, 0
    %v543 = vand.u32 %v539, 2139095040
    %v544 = vshrl.u32 %v543, 23
    %v545 = vsub.s32 %v544, 127
    %v546 = vand.u32 2147483647, %v539
    %v547 = vand.u32 %v546, 8388607
    %v548 = vor.u32 %v547, 8388608
    %v549 = vsub.s32 0, %v548
    %v550 = vadd.s32 %v545, 1
    %vm551 = vcmp.gt.s32.totalorder %v550, 0
    %v552 = vsel %vm551, %v550, 0
    %v553 = vshrl.u32 %v552, 5
    %v554 = vand.u32 %v552, 31
    %v555 = vsub.s32 32, %v554
    %v556 = vshrl.u32 683565275, %v555
    %v557 = vshll.u32 683565275, %v554
    %v558 = vshrl.u32 2475754826, %v555
    %v559 = vor.u32 %v557, %v558
    %v560 = vshll.u32 2475754826, %v554
    %v561 = vshrl.u32 2131351028, %v555
    %v562 = vor.u32 %v560, %v561
    %v563 = vshll.u32 2131351028, %v554
    %v564 = vshrl.u32 2102212464, %v555
    %v565 = vor.u32 %v563, %v564
    %v566 = vshll.u32 2102212464, %v554
    %v567 = vshrl.u32 920167782, %v555
    %v568 = vor.u32 %v566, %v567
    %v569 = vshll.u32 920167782, %v554
    %v570 = vshrl.u32 1326507024, %v555
    %v571 = vor.u32 %v569, %v570
    %vm572 = vcmp.lt.s32.totalorder %v553, 1
    %vm573 = vcmp.lt.s32.totalorder %v553, 2
    %vm574 = vcmp.lt.s32.totalorder %v553, 3
    %vm575 = vcmp.lt.s32.totalorder %v553, 4
    %v576 = vsel %vm572, %v556, %v559
    %v577 = vsel %vm575, %v565, 2102212464
    %v578 = vsel %vm574, %v562, %v577
    %v579 = vsel %vm573, %v576, %v578
    %v580 = vsel %vm572, %v559, %v562
    %v581 = vsel %vm575, %v568, 920167782
    %v582 = vsel %vm574, %v565, %v581
    %v583 = vsel %vm573, %v580, %v582
    %v584 = vsel %vm572, %v562, %v565
    %v585 = vsel %vm575, %v571, 1326507024
    %v586 = vsel %vm574, %v568, %v585
    %v587 = vsel %vm573, %v584, %v586
    %v588 = vshll.u32 %v548, 8
    %v589 = vmul.u32.u64.compose %v588, %v587
    %v590 = vextract.low.u32 %v589
    %v591 = vextract.high.u32 %v589
    %v592 = vmul.u32.u64.compose %v588, %v583
    %v593 = vextract.low.u32 %v592
    %v594 = vextract.high.u32 %v592
    %v595 = vmul.u32 %v588, %v579
    %v596 = vadd.s32 %v591, %v593
    %vm597 = vc.u32 %v591, %v593
    %v598 = vadd.s32 %v594, 1
    %v599 = vsel %vm597, %v598, %v594
    %v600 = vadd.s32 %v595, %v599
    %v601 = vadd.s32 %v600, 536870912
    %v602 = vshrl.u32 %v601, 30
    %v603 = vshll.u32 %v602, 30
    %v604 = vsub.s32 %v600, %v603
    %vm605 = vcmp.lt.s32.totalorder %v604, 0
    %v606 = vsub.s32 0, %v604
    %v607 = vsel %vm605, %v606, %v604
    %v608 = vclz %v607
    %v609 = vsub.s32 %v608, 2
    %vm610 = vcmp.gt.s32.totalorder 0, %v609
    %v611 = vsel %vm610, 0, %v609
    %v612 = vsub.s32 32, %v611
    %v613 = vshll.u32 %v604, %v611
    %v614 = vshrl.u32 %v596, %v612
    %v615 = vor.u32 %v613, %v614
    %v616 = vsub.s32 4294967266, %v611
    %v617 = vadd.s32 %v616, 127
    %v618 = vshll.u32 %v617, 23
    %v619 = vor.u32 4788187, %v618
    %v620 = vand.u32 2147483647, %v619
    %v622 = vcvt.s32.f32 %v615
    %v623 = vmul.f32 %v622, %v620
    %v624 = vxor.u32 %v623, 2147483648
    %v625 = vsel %vm542, %v624, %v623
    %v626 = vsub.s32 4, %v602
    %v627 = vsel %vm542, %v626, %v602
    %v628 = vsel %vm541, %v539, %v625
    %v629 = vsel %vm541, 0, %v627
    %v630 = vcosq.f32.pop %v628
    %v631 = vsinq.f32.pop %v628
    %vm632 = vweird.f32 %v539
    %v633 = vand.u32 %v629, 3
    %vm634 = vcmp.lt.s32.totalorder %v633, 2
    %vm635 = vcmp.eq.s32.totalorder %v633, 0
    %v636 = vxor.u32 %v631, 2147483648
    %v637 = vsel %vm635, %v630, %v636
    %vm638 = vcmp.eq.s32.totalorder %v633, 2
    %v639 = vxor.u32 %v630, 2147483648
    %v640 = vsel %vm638, %v639, %v631
    %v641 = vsel %vm634, %v637, %v640
    %v642 = vsel %vm632, nan, %v641
    %v643 = vand.u32 2147483647, %v539
    %vm644 = vcmp.le.f32.partialorder %v643, 0.7853982
    %vm645 = vcmp.lt.s32.totalorder %v539, 0
    %v646 = vand.u32 %v539, 2139095040
    %v647 = vshrl.u32 %v646, 23
    %v648 = vsub.s32 %v647, 127
    %v649 = vand.u32 2147483647, %v539
    %v650 = vand.u32 %v649, 8388607
    %v651 = vor.u32 %v650, 8388608
    %v652 = vsub.s32 0, %v651
    %v653 = vadd.s32 %v648, 1
    %vm654 = vcmp.gt.s32.totalorder %v653, 0
    %v655 = vsel %vm654, %v653, 0
    %v656 = vshrl.u32 %v655, 5
    %v657 = vand.u32 %v655, 31
    %v658 = vsub.s32 32, %v657
    %v659 = vshrl.u32 683565275, %v658
    %v660 = vshll.u32 683565275, %v657
    %v661 = vshrl.u32 2475754826, %v658
    %v662 = vor.u32 %v660, %v661
    %v663 = vshll.u32 2475754826, %v657
    %v664 = vshrl.u32 2131351028, %v658
    %v665 = vor.u32 %v663, %v664
    %v666 = vshll.u32 2131351028, %v657
    %v667 = vshrl.u32 2102212464, %v658
    %v668 = vor.u32 %v666, %v667
    %v669 = vshll.u32 2102212464, %v657
    %v670 = vshrl.u32 920167782, %v658
    %v671 = vor.u32 %v669, %v670
    %v672 = vshll.u32 920167782, %v657
    %v673 = vshrl.u32 1326507024, %v658
    %v674 = vor.u32 %v672, %v673
    %vm675 = vcmp.lt.s32.totalorder %v656, 1
    %vm676 = vcmp.lt.s32.totalorder %v656, 2
    %vm677 = vcmp.lt.s32.totalorder %v656, 3
    %vm678 = vcmp.lt.s32.totalorder %v656, 4
    %v679 = vsel %vm675, %v659, %v662
    %v680 = vsel %vm678, %v668, 2102212464
    %v681 = vsel %vm677, %v665, %v680
    %v682 = vsel %vm676, %v679, %v681
    %v683 = vsel %vm675, %v662, %v665
    %v684 = vsel %vm678, %v671, 920167782
    %v685 = vsel %vm677, %v668, %v684
    %v686 = vsel %vm676, %v683, %v685
    %v687 = vsel %vm675, %v665, %v668
    %v688 = vsel %vm678, %v674, 1326507024
    %v689 = vsel %vm677, %v671, %v688
    %v690 = vsel %vm676, %v687, %v689
    %v691 = vshll.u32 %v651, 8
    %v692 = vmul.u32.u64.compose %v691, %v690
    %v693 = vextract.low.u32 %v692
    %v694 = vextract.high.u32 %v692
    %v695 = vmul.u32.u64.compose %v691, %v686
    %v696 = vextract.low.u32 %v695
    %v697 = vextract.high.u32 %v695
    %v698 = vmul.u32 %v691, %v682
    %v699 = vadd.s32 %v694, %v696
    %vm700 = vc.u32 %v694, %v696
    %v701 = vadd.s32 %v697, 1
    %v702 = vsel %vm700, %v701, %v697
    %v703 = vadd.s32 %v698, %v702
    %v704 = vadd.s32 %v703, 536870912
    %v705 = vshrl.u32 %v704, 30
    %v706 = vshll.u32 %v705, 30
    %v707 = vsub.s32 %v703, %v706
    %vm708 = vcmp.lt.s32.totalorder %v707, 0
    %v709 = vsub.s32 0, %v707
    %v710 = vsel %vm708, %v709, %v707
    %v711 = vclz %v710
    %v712 = vsub.s32 %v711, 2
    %vm713 = vcmp.gt.s32.totalorder 0, %v712
    %v714 = vsel %vm713, 0, %v712
    %v715 = vsub.s32 32, %v714
    %v716 = vshll.u32 %v707, %v714
    %v717 = vshrl.u32 %v699, %v715
    %v718 = vor.u32 %v716, %v717
    %v719 = vsub.s32 4294967266, %v714
    %v720 = vadd.s32 %v719, 127
    %v721 = vshll.u32 %v720, 23
    %v722 = vor.u32 4788187, %v721
    %v723 = vand.u32 2147483647, %v722
    %v725 = vcvt.s32.f32 %v718
    %v726 = vmul.f32 %v725, %v723
    %v727 = vxor.u32 %v726, 2147483648
    %v728 = vsel %vm645, %v727, %v726
    %v729 = vsub.s32 4, %v705
    %v730 = vsel %vm645, %v729, %v705
    %v731 = vsel %vm644, %v539, %v728
    %v732 = vsel %vm644, 0, %v730
    %v733 = vcosq.f32.pop %v731
    %v734 = vsinq.f32.pop %v731
    %vm735 = vweird.f32 %v539
    %v736 = vadd.s32 %v732, 3
    %v737 = vand.u32 %v736, 3
    %vm738 = vcmp.lt.s32.totalorder %v737, 2
    %vm739 = vcmp.eq.s32.totalorder %v737, 0
    %v740 = vxor.u32 %v734, 2147483648
    %v741 = vsel %vm739, %v733, %v740
    %vm742 = vcmp.eq.s32.totalorder %v737, 2
    %v743 = vxor.u32 %v733, 2147483648
    %v744 = vsel %vm742, %v743, %v734
    %v745 = vsel %vm738, %v741, %v744
    %v746 = vsel %vm735, nan, %v745
    %v747 = vmul.f32 %v642, %v488
    %v748 = vmul.f32 %v746, %v488
    %750 = vrot.lane.b32.xlu0 %v748, 127
    %v751 = vpop.permute.xlu0 %750
    %v753 = vsub.f32 %v747, %v751
    %755 = vrot.lane.b32.xlu0 %v747, 127
    %v756 = vpop.permute.xlu0 %755
    %v758 = vadd.f32 %v748, %v756
    %760 = vset.pattern.permute.xlu0 0
    %761 = vperm.xlu0 %760, %v758
    %v762 = vpop.permute.xlu0 %761
    %v764 = vsel %vm476, %v762, %v488
    %766 = vset.pattern.permute.xlu0 0
    %767 = vperm.xlu0 %766, %v753
    %v768 = vpop.permute.xlu0 %767
    %v770 = vsel %vm475, %v768, %v764
    %v771 = vpack.c.bf16 %v770, %v770
    %v772 = vld [vmem:[#allocation10] sm:$0xff]
    %v773 = vld [vmem:[#allocation10 + $0x8] sm:$0xff]
    %v774 = vld [vmem:[#allocation10 + $0x10] sm:$0xff]
    %v775 = vld [vmem:[#allocation10 + $0x18] sm:$0xff]
    %v776 = vpack.c.bf16 %v773, %v772
    %v777 = vpack.c.bf16 %v775, %v774
    %v778 = vlaneseq
    %v779 = vshrl.u32 %v778, 7
    %v780 = vsub.s32 3, %v779
    %v781 = vrot.slane %v104, %v780
    %v783 = vsel %vm159, %v771, 0
    %785 = vmatprep.subr.bf16.mxu0 0
    %786 = vmatpush1.bf16.msra.mxu0 0
    %787 = vmatprep.subr.bf16.mxu0 0
    %788 = vmatpush1.bf16.msra.mxu0 0
    %789 = vmatprep.subr.bf16.mxu0 0
    %790 = vmatpush1.bf16.msra.mxu0 0
    %791 = vmatprep.subr.bf16.mxu0 0
    %792 = vmatpush1.bf16.msra.mxu0 0
    %793 = vmatprep.subr.bf16.mxu0 0
    %794 = vmatpush1.bf16.msra.mxu0 0
    %795 = vmatprep.subr.bf16.mxu0 0
    %796 = vmatpush1.bf16.msra.mxu0 0
    %797 = vmatprep.subr.bf16.mxu0 0
    %798 = vmatpush1.bf16.msra.mxu0 %v777
    %799 = vmatprep.subr.bf16.mxu0 0
    %800 = vmatpush1.bf16.msra.mxu0 %v776
    %801 = vmatprep.subr.bf16.mxu0 0
    %802 = vmatpush2.bf16.msra.mxu0 0
    %803 = vmatprep.subr.bf16.mxu0 0
    %804 = vmatpush2.bf16.msra.mxu0 0
    %805 = vmatprep.subr.bf16.mxu0 0
    %806 = vmatpush2.bf16.msra.mxu0 0
    %807 = vmatprep.subr.bf16.mxu0 0
    %808 = vmatpush2.bf16.msra.mxu0 0
    %809 = vmatprep.subr.bf16.mxu0 0
    %810 = vmatpush2.bf16.msra.mxu0 0
    %811 = vmatprep.subr.bf16.mxu0 0
    %812 = vmatpush2.bf16.msra.mxu0 0
    %813 = vmatprep.subr.bf16.mxu0 0
    %814 = vmatpush2.bf16.msra.mxu0 0
    %815 = vmatprep.subr.bf16.mxu0 0
    %816 = vmatpush2.bf16.msra.mxu0 0
    %817 = vmatprep.mubr.bf16.mxu0 0
    %818 = vmatmul.mubr.bf16.gmra.mxu0 %v783
    %v819 = vpop.f32.mrf.mxu0
    %v820 = vadd.f32 %v781, %v819
    %v821 = vpop.f32.mrf.mxu0
    %v822 = vpop.f32.mrf.mxu0
    %v823 = vpop.f32.mrf.mxu0
    %824 = vdwg.mxu0
    %v825 = vmax.f32 %v820, 0.0
    %v826 = vpack.c.bf16 %v825, %v825
    %v827 = vld [vmem:[#allocation11] sm:$0xff]
    %v828 = vld [vmem:[#allocation11 + $0x8] sm:$0xff]
    %v829 = vld [vmem:[#allocation11 + $0x10] sm:$0xff]
    %v830 = vld [vmem:[#allocation11 + $0x18] sm:$0xff]
    %v831 = vpack.c.bf16 %v828, %v827
    %v832 = vpack.c.bf16 %v830, %v829
    %v833 = vld [vmem:[%s6] sm:$0x1]
    %v835 = vlaneseq
    %v836 = vshrl.u32 %v835, 7
    %v837 = vsub.s32 0, %v836
    %v838 = vrot.slane %v833, %v837
    %v841 = vsel %vm159, %v826, 0
    %843 = vmatprep.subr.bf16.mxu0 0
    %844 = vmatpush1.bf16.msra.mxu0 0
    %845 = vmatprep.subr.bf16.mxu0 0
    %846 = vmatpush1.bf16.msra.mxu0 0
    %847 = vmatprep.subr.bf16.mxu0 0
    %848 = vmatpush1.bf16.msra.mxu0 0
    %849 = vmatprep.subr.bf16.mxu0 0
    %850 = vmatpush1.bf16.msra.mxu0 0
    %851 = vmatprep.subr.bf16.mxu0 0
    %852 = vmatpush1.bf16.msra.mxu0 0
    %853 = vmatprep.subr.bf16.mxu0 0
    %854 = vmatpush1.bf16.msra.mxu0 0
    %855 = vmatprep.subr.bf16.mxu0 0
    %856 = vmatpush1.bf16.msra.mxu0 %v832
    %857 = vmatprep.subr.bf16.mxu0 0
    %858 = vmatpush1.bf16.msra.mxu0 %v831
    %859 = vmatprep.subr.bf16.mxu0 0
    %860 = vmatpush2.bf16.msra.mxu0 0
    %861 = vmatprep.subr.bf16.mxu0 0
    %862 = vmatpush2.bf16.msra.mxu0 0
    %863 = vmatprep.subr.bf16.mxu0 0
    %864 = vmatpush2.bf16.msra.mxu0 0
    %865 = vmatprep.subr.bf16.mxu0 0
    %866 = vmatpush2.bf16.msra.mxu0 0
    %867 = vmatprep.subr.bf16.mxu0 0
    %868 = vmatpush2.bf16.msra.mxu0 0
    %869 = vmatprep.subr.bf16.mxu0 0
    %870 = vmatpush2.bf16.msra.mxu0 0
    %871 = vmatprep.subr.bf16.mxu0 0
    %872 = vmatpush2.bf16.msra.mxu0 0
    %873 = vmatprep.subr.bf16.mxu0 0
    %874 = vmatpush2.bf16.msra.mxu0 0
    %875 = vmatprep.mubr.bf16.mxu0 0
    %876 = vmatmul.mubr.bf16.gmra.mxu0 %v841
    %v877 = vpop.f32.mrf.mxu0
    %v878 = vadd.f32 %v838, %v877
    %v879 = vpop.f32.mrf.mxu0
    %v880 = vpop.f32.mrf.mxu0
    %v881 = vpop.f32.mrf.mxu0
    %882 = vdwg.mxu0
    %883 = vmax.xlane.f32.xlu0 %v878
    %v884 = vpop.xlane.xlu0 %883
    %v885 = vsub.f32 %v878, %v884
    %v886 = vmul.f32 %v885, 1.442695
    %v887 = vpow.pop %v886
    %888 = vadd.xlane.f32.xlu0 %v887
    %v889 = vpop.xlane.xlu0 %888
    %v890 = vlog2.pop %v889
    %v891 = vmul.f32 %v890, 0.6931472
    %v892 = vsub.f32 %v885, %v891
    %893 = vst [vmem:[#allocation13] sm:$0xff] %v892
    // Predicated region
    $region54: #{tpu_custom_call.1} parent=1 // pred_check
      _
    $region55: #{tpu_custom_call.1} parent=1 // pred_check_branch
      %895 = sbr.rel (0) target = $region57
    $region56: #{tpu_custom_call.1} parent=1 // pred_region
      %s897 = ssub.s32 128, 128
      %898 = vsyncadd [#allocation4], %s897
      %s900 = sshll.u32 [#allocation13], 4
      %s901 = int_to_ptr.vmem [resolvable:$true] %s900
      %903 = dma.vmem_to_hbm [thread:$0]  %s901, 128, %s7, [#allocation4]
    $region57: #{tpu_custom_call.1} parent=1 // pred_fallthru
      _
    // Predicated region
    $region58: #{tpu_custom_call.1} parent=1 // pred_check
      _
    $region59: #{tpu_custom_call.1} parent=1 // pred_check_branch
      %905 = sbr.rel (0) target = $region61
    $region60: #{tpu_custom_call.1} parent=1 // pred_region
      %906 = dma.done [#allocation4], 128
    $region61: #{tpu_custom_call.1} parent=1 // pred_fallthru
      _
    %907 = vsyncpa [#allocation3], 1
    %908 = vsyncpa [#allocation6], 1
    %909 = vsyncpa [#allocation9], 1
    %910 = vsyncpa [#allocation12], 1
    %911 = vsyncpa [#allocation4], 1

</llo_original>
